<compile_context>
chip_gen: v7x
topology: tpu7x:2x2x1
jax: 0.10.0
libtpu: 0.0.40
codegen_flags: <defaults>
</compile_context>

<pallas_src>
import functools

import jax
import jax.numpy as jnp
import numpy as np
from jax.experimental import pallas as pl
from jax.experimental.pallas import tpu as pltpu

BN_EPS = 1e-5  # nn.BatchNorm2d default


# ---------------------------------------------------------------------------
# Pass 1: conv1 (3x3, bias dropped -- cancels with BN mean) + BN batch stats.
# ---------------------------------------------------------------------------
def conv1_stats_kernel(x_ref, w1b_ref, proj_ref, gamma_ref, beta_ref,
                       fea_ref, ss_ref, *, inv_m):
    # x_ref:     (Hs, 2*W*Cin)            one batch, superrow layout, f32
    # w1b_ref:   (3, 2*W*Cin, 2*W*Cout)   superrow band weights, bf16
    # proj_ref:  (2*W*Cout, 2*W*Cout)     0/1 channel-group projector, f32
    # gamma_ref: (1, 2*W*Cout)            BN gamma tiled over lanes, f32
    # beta_ref:  (1, 2*W*Cout)            BN beta  tiled over lanes, f32
    # fea_ref:   (Hs, 2*W*Cout)           pre-BN conv1 output (f32, to HBM)
    # ss_ref:    (2, 2*W*Cout)            resident: [sum; sumsq] -> [scale; shift]
    b = pl.program_id(0)
    nb = pl.num_programs(0)
    Hs = x_ref.shape[0]

    xb = x_ref[...].astype(jnp.bfloat16)          # single cast, reused 3x

    # 3x3 conv == 3 superrow band matmuls; vertical 'same' padding is the
    # restricted row range of the up/down adds (no padded scratch, no copies).
    mid = jnp.dot(xb, w1b_ref[1], preferred_element_type=jnp.float32)
    up = jnp.dot(xb, w1b_ref[0], preferred_element_type=jnp.float32)
    dn = jnp.dot(xb, w1b_ref[2], preferred_element_type=jnp.float32)
    fea_ref[...] = mid
    fea_ref[1:Hs, :] += up[0:Hs - 1]     # superrow s gets tap from superrow s-1
    fea_ref[0:Hs - 1, :] += dn[1:Hs]     # superrow s gets tap from superrow s+1

    # BatchNorm2d batch statistics (fresh module => training mode).
    acc1 = fea_ref[...]
    rs = jnp.sum(acc1, axis=0, keepdims=True)            # (1, 2*W*Cout)
    rs2 = jnp.sum(acc1 * acc1, axis=0, keepdims=True)

    @pl.when(b == 0)
    def _init():
        ss_ref[...] = jnp.zeros_like(ss_ref)

    ss_ref[0:1, :] += rs
    ss_ref[1:2, :] += rs2

    @pl.when(b == nb - 1)
    def _finalize():
        # One fused (2,L)@(L,L) projector dot: per-channel totals broadcast
        # back onto the lane axis for both sum and sum-of-squares at once.
        g = jnp.dot(ss_ref[...], proj_ref[...],
                    preferred_element_type=jnp.float32)
        mean = g[0:1, :] * inv_m
        # TODO(synk): E[x^2]-mean^2 is cancellation-prone when |mean|>>std;
        # use a shifted / two-pass variance before trusting this at scale.
        var = g[1:2, :] * inv_m - mean * mean             # biased variance
        scale = gamma_ref[...] * jax.lax.rsqrt(var + BN_EPS)
        shift = beta_ref[...] - mean * scale
        ss_ref[0:1, :] = scale
        ss_ref[1:2, :] = shift
    # TODO(synk): running_mean/running_var buffer updates are a training-time
    # side effect and do not affect the forward output; not modeled here.


# ---------------------------------------------------------------------------
# Pass 2: BN affine + ReLU + conv2 (3x3) + bias + residual.  Per-batch
# independent -> "parallel" grid axis (both TensorCores on v7x).
# ---------------------------------------------------------------------------
def bn_relu_conv2_kernel(fea_ref, ss_ref, x_ref, w2b_ref, b2_ref, out_ref):
    # fea_ref: (Hs, 2*W*Cout)  pre-BN conv1 output, f32
    # ss_ref:  (2, 2*W*Cout)   [scale; shift] from pass 1
    # x_ref:   (Hs, 2*W*Cin)   residual input, f32
    # w2b_ref: (3, 2*W*Cout, 2*W*Cin)  superrow band weights, bf16
    # b2_ref:  (1, 2*W*Cin)    conv2 bias tiled over lanes, f32
    # out_ref: (Hs, 2*W*Cin)
    Hs = fea_ref.shape[0]

    y = jnp.maximum(fea_ref[...] * ss_ref[0:1, :] + ss_ref[1:2, :], 0.0)
    yb = y.astype(jnp.bfloat16)

    mid = jnp.dot(yb, w2b_ref[1], preferred_element_type=jnp.float32)
    up = jnp.dot(yb, w2b_ref[0], preferred_element_type=jnp.float32)
    dn = jnp.dot(yb, w2b_ref[2], preferred_element_type=jnp.float32)

    out_ref[...] = mid + x_ref[...] + b2_ref[...]
    out_ref[1:Hs, :] += up[0:Hs - 1]
    out_ref[0:Hs - 1, :] += dn[1:Hs]


# ---------------------------------------------------------------------------
# One-time weight preparation (would live in module init).
# ---------------------------------------------------------------------------
def conv3x3_to_hband(w_hwio, width):
    """(3,3,Ci,Co) HWIO -> (3, width*Ci, width*Co) horizontal band matrices.

    band[ky, xin*Ci+ci, xo*Co+co] = w[ky, kx, ci, co] with xin = xo + kx - 1;
    out-of-range taps are dropped => horizontal 'same' zero padding for free.
    """
    kh, kw, ci, co = w_hwio.shape
    w_np = np.asarray(w_hwio, dtype=np.float32)
    band = np.zeros((kh, width * ci, width * co), np.float32)
    for ky in range(kh):
        for kx in range(kw):
            for xo in range(width):
                xin = xo + kx - 1
                if 0 <= xin < width:
                    band[ky, xin * ci:(xin + 1) * ci,
                         xo * co:(xo + 1) * co] = w_np[ky, kx]
    return band


def conv3x3_to_superband(w_hwio, width):
    """Superrow (2-row) band weights: (3, 2*width*Ci, 2*width*Co).

    Lane layout: lane = r*(width*C) + x*C + c with r the row-within-pair.
    B[0]/B[1]/B[2] are the taps from the superrow above / same / below.
    """
    hb = conv3x3_to_hband(w_hwio, width)
    _, Ki, Ko = hb.shape
    B = np.zeros((3, 2 * Ki, 2 * Ko), np.float32)
    # superrow above: its bottom row feeds output row 0 of the pair via ky=0
    B[0, Ki:, :Ko] = hb[0]
    # same superrow
    B[1, :Ki, :Ko] = hb[1]   # top row    -> out row 0 (ky=1)
    B[1, :Ki, Ko:] = hb[0]   # top row    -> out row 1 (ky=0)
    B[1, Ki:, :Ko] = hb[2]   # bottom row -> out row 0 (ky=2)
    B[1, Ki:, Ko:] = hb[1]   # bottom row -> out row 1 (ky=1)
    # superrow below: its top row feeds output row 1 of the pair via ky=2
    B[2, :Ki, Ko:] = hb[2]
    return B


def channel_group_projector(lanes, c):
    """(lanes, lanes) 0/1 matrix with P[i,j] = (i % c == j % c)."""
    idx = np.arange(lanes) % c
    return (idx[:, None] == idx[None, :]).astype(np.float32)


# ---------------------------------------------------------------------------
# Wrapper: NCHW <-> lane-dense superrow layout + the two pallas_calls.
# ---------------------------------------------------------------------------
def resblock_pallas(x_nchw, w1b_super, bn_proj, gamma_lane, beta_lane,
                    w2b_super, b2_lane):
    N, Cin, H, W = x_nchw.shape
    assert H % 2 == 0, "superrow layout pairs image rows"
    Hs = H // 2
    Lin = 2 * W * Cin                 # 128 at the test shape
    Lout = w1b_super.shape[2]         # 2*W*Cout = 256 at the test shape

    # NCHW -> (N, Hs, 2*W*Cin); lane = r*(W*Cin) + w*Cin + c (lane-dense).
    x_sr = jnp.transpose(x_nchw, (0, 2, 3, 1)).astype(jnp.float32)
    x_sr = x_sr.reshape(N, Hs, Lin)

    def batch_block(lanes):
        return pl.BlockSpec((None, Hs, lanes), lambda b: (b, 0, 0))

    def full_block(arr):
        return pl.BlockSpec(arr.shape, lambda b: (0,) * arr.ndim)

    kernel1 = functools.partial(conv1_stats_kernel, inv_m=1.0 / (N * H * W))
    fea_pre, scaleshift = pl.pallas_call(
        kernel1,
        grid=(N,),
        in_specs=[
            batch_block(Lin),          # x (superrow layout)
            full_block(w1b_super),     # (3, Lin, Lout) bf16
            full_block(bn_proj),       # (Lout, Lout)
            full_block(gamma_lane),    # (1, Lout)
            full_block(beta_lane),     # (1, Lout)
        ],
        out_specs=(
            batch_block(Lout),                           # pre-BN conv1 output
            pl.BlockSpec((2, Lout), lambda b: (0, 0)),   # resident stats block
        ),
        out_shape=(
            jax.ShapeDtypeStruct((N, Hs, Lout), jnp.float32),
            jax.ShapeDtypeStruct((2, Lout), jnp.float32),
        ),
        compiler_params=pltpu.CompilerParams(
            dimension_semantics=("arbitrary",)),   # stats accumulate across b
    )(x_sr, w1b_super, bn_proj, gamma_lane, beta_lane)

    out_sr = pl.pallas_call(
        bn_relu_conv2_kernel,
        grid=(N,),
        in_specs=[
            batch_block(Lout),                           # fea_pre
            pl.BlockSpec((2, Lout), lambda b: (0, 0)),   # scale/shift
            batch_block(Lin),                            # x (residual)
            full_block(w2b_super),                       # (3, Lout, Lin) bf16
            full_block(b2_lane),                         # (1, Lin)
        ],
        out_specs=batch_block(Lin),
        out_shape=jax.ShapeDtypeStruct((N, Hs, Lin), jnp.float32),
        compiler_params=pltpu.CompilerParams(
            dimension_semantics=("parallel",)),    # batches independent here
    )(fea_pre, scaleshift, x_sr, w2b_super, b2_lane)

    return jnp.transpose(out_sr.reshape(N, H, W, Cin), (0, 3, 1, 2))


# ---------------------------------------------------------------------------
# Pure-JAX reference mirroring the PyTorch forward (NCHW in/out, all f32).
# ---------------------------------------------------------------------------
def resblock_reference(x_nchw, w1_hwio, b1, gamma, beta, w2_hwio, b2):
    dn = ('NHWC', 'HWIO', 'NHWC')
    x = jnp.transpose(x_nchw, (0, 2, 3, 1))
    f = jax.lax.conv_general_dilated(x, w1_hwio, (1, 1), 'SAME',
                                     dimension_numbers=dn) + b1
    mean = jnp.mean(f, axis=(0, 1, 2), keepdims=True)
    var = jnp.mean((f - mean) ** 2, axis=(0, 1, 2), keepdims=True)
    f = (f - mean) * jax.lax.rsqrt(var + BN_EPS) * gamma + beta
    f = jnp.maximum(f, 0.0)
    f = jax.lax.conv_general_dilated(f, w2_hwio, (1, 1), 'SAME',
                                     dimension_numbers=dn) + b2
    return jnp.transpose(f + x, (0, 3, 1, 2))


if __name__ == "__main__":
    # Small shapes consistent with the module: ResBlock(in_nc=4, out_nc=8)
    N, Cin, Cout, H, W = 2, 4, 8, 16, 16

    key = jax.random.PRNGKey(0)
    k_x, k_w1, k_b1, k_g, k_bt, k_w2, k_b2 = jax.random.split(key, 7)

    x = jax.random.normal(k_x, (N, Cin, H, W), jnp.float32)

    # deterministic synthetic parameters (HWIO conv weights)
    w1_hwio = 0.1 * jax.random.normal(k_w1, (3, 3, Cin, Cout), jnp.float32)
    b1 = 0.1 * jax.random.normal(k_b1, (1, Cout), jnp.float32)
    gamma = 1.0 + 0.1 * jax.random.normal(k_g, (1, Cout), jnp.float32)
    beta = 0.1 * jax.random.normal(k_bt, (1, Cout), jnp.float32)
    w2_hwio = 0.1 * jax.random.normal(k_w2, (3, 3, Cout, Cin), jnp.float32)
    b2 = 0.1 * jax.random.normal(k_b2, (1, Cin), jnp.float32)

    # one-time weight prep (would live in module init); band weights in bf16.
    w1b_super = jnp.asarray(conv3x3_to_superband(w1_hwio, W),
                            dtype=jnp.bfloat16)      # (3, 2*W*Cin,  2*W*Cout)
    w2b_super = jnp.asarray(conv3x3_to_superband(w2_hwio, W),
                            dtype=jnp.bfloat16)      # (3, 2*W*Cout, 2*W*Cin)
    gamma_lane = jnp.tile(gamma, (1, 2 * W))         # (1, 2*W*Cout)
    beta_lane = jnp.tile(beta, (1, 2 * W))           # (1, 2*W*Cout)
    b2_lane = jnp.tile(b2, (1, 2 * W))               # (1, 2*W*Cin)
    bn_proj = jnp.asarray(channel_group_projector(2 * W * Cout, Cout))
    # conv1 bias b1 intentionally not passed: it cancels with the BN mean.

    out = resblock_pallas(x, w1b_super, bn_proj, gamma_lane, beta_lane,
                          w2b_super, b2_lane)
    out = jax.block_until_ready(out)

    ref = resblock_reference(x, w1_hwio, b1, gamma, beta, w2_hwio, b2)
    assert out.shape == x.shape
    max_err = float(jnp.max(jnp.abs(out - ref)))
    # bf16 MXU operands with f32 accumulation vs. an all-f32 reference:
    # expected error is a few 1e-3; 2e-2 is the bf16-operand tolerance.
    assert jnp.allclose(out, ref, rtol=2e-2, atol=2e-2), max_err

    print("KERNEL_OK")
</pallas_src>

<mosaic_0001>
module attributes {stable_mosaic.version = 11 : i64} {
  func.func @conv1_stats_kernel(%arg0: i32, %arg1: memref<1x8x128xf32, #tpu.memory_space<vmem>>, %arg2: memref<3x128x256xbf16, #tpu.memory_space<vmem>>, %arg3: memref<256x256xf32, #tpu.memory_space<vmem>>, %arg4: memref<1x256xf32, #tpu.memory_space<vmem>>, %arg5: memref<1x256xf32, #tpu.memory_space<vmem>>, %arg6: memref<1x8x256xf32, #tpu.memory_space<vmem>>, %arg7: memref<2x256xf32, #tpu.memory_space<vmem>>) attributes {dimension_semantics = [#tpu.dimension_semantics<arbitrary>], iteration_bounds = array<i64: 2>, scalar_prefetch = 0 : i64, scratch_operands = 0 : i64, tpu.core_type = #tpu.core_type<tc>, window_params = [{transform_indices = @transform_0, window_bounds = array<i64: 1, 8, 128>}, {pipeline_mode = #tpu.pipeline_mode<synchronous>, transform_indices = @transform_1, window_bounds = array<i64: 3, 128, 256>}, {pipeline_mode = #tpu.pipeline_mode<synchronous>, transform_indices = @transform_2, window_bounds = array<i64: 256, 256>}, {pipeline_mode = #tpu.pipeline_mode<synchronous>, transform_indices = @transform_3, window_bounds = array<i64: 1, 256>}, {pipeline_mode = #tpu.pipeline_mode<synchronous>, transform_indices = @transform_4, window_bounds = array<i64: 1, 256>}, {transform_indices = @transform_5, window_bounds = array<i64: 1, 8, 256>}, {pipeline_mode = #tpu.pipeline_mode<synchronous>, transform_indices = @transform_6, window_bounds = array<i64: 2, 256>}]} {
    %c0 = arith.constant 0 : index
    %c0_0 = arith.constant 0 : index
    %c0_1 = arith.constant 0 : index
    %0 = vector.load %arg1[%c0, %c0_0, %c0_1] : memref<1x8x128xf32, #tpu.memory_space<vmem>>, vector<1x8x128xf32>
    %1 = vector.shape_cast %0 : vector<1x8x128xf32> to vector<8x128xf32>
    %2 = arith.truncf %1 : vector<8x128xf32> to vector<8x128xbf16>
    %c1 = arith.constant 1 : index
    %c0_2 = arith.constant 0 : index
    %c0_3 = arith.constant 0 : index
    %3 = vector.load %arg2[%c1, %c0_2, %c0_3] : memref<3x128x256xbf16, #tpu.memory_space<vmem>>, vector<1x128x256xbf16>
    %4 = vector.shape_cast %3 : vector<1x128x256xbf16> to vector<128x256xbf16>
    %cst = arith.constant dense<0.000000e+00> : vector<8x256xf32>
    %5 = tpu.matmul %2, %4, %cst {dimension_numbers = #tpu.dot_dimension_numbers<[1], [0], [0], [1], [0, 0, 1, 1], [], []>} : vector<8x128xbf16>, vector<128x256xbf16>, vector<8x256xf32> -> vector<8x256xf32>
    %c0_4 = arith.constant 0 : index
    %c0_5 = arith.constant 0 : index
    %c0_6 = arith.constant 0 : index
    %6 = vector.load %arg2[%c0_4, %c0_5, %c0_6] : memref<3x128x256xbf16, #tpu.memory_space<vmem>>, vector<1x128x256xbf16>
    %7 = vector.shape_cast %6 : vector<1x128x256xbf16> to vector<128x256xbf16>
    %cst_7 = arith.constant dense<0.000000e+00> : vector<8x256xf32>
    %8 = tpu.matmul %2, %7, %cst_7 {dimension_numbers = #tpu.dot_dimension_numbers<[1], [0], [0], [1], [0, 0, 1, 1], [], []>} : vector<8x128xbf16>, vector<128x256xbf16>, vector<8x256xf32> -> vector<8x256xf32>
    %c2 = arith.constant 2 : index
    %c0_8 = arith.constant 0 : index
    %c0_9 = arith.constant 0 : index
    %9 = vector.load %arg2[%c2, %c0_8, %c0_9] : memref<3x128x256xbf16, #tpu.memory_space<vmem>>, vector<1x128x256xbf16>
    %10 = vector.shape_cast %9 : vector<1x128x256xbf16> to vector<128x256xbf16>
    %cst_10 = arith.constant dense<0.000000e+00> : vector<8x256xf32>
    %11 = tpu.matmul %2, %10, %cst_10 {dimension_numbers = #tpu.dot_dimension_numbers<[1], [0], [0], [1], [0, 0, 1, 1], [], []>} : vector<8x128xbf16>, vector<128x256xbf16>, vector<8x256xf32> -> vector<8x256xf32>
    %c0_11 = arith.constant 0 : index
    %c0_12 = arith.constant 0 : index
    %c0_13 = arith.constant 0 : index
    %12 = vector.load %arg6[%c0_11, %c0_12, %c0_13] : memref<1x8x256xf32, #tpu.memory_space<vmem>>, vector<1x8x256xf32>
    %13 = vector.shape_cast %12 : vector<1x8x256xf32> to vector<8x256xf32>
    %14 = vector.shape_cast %5 : vector<8x256xf32> to vector<1x8x256xf32>
    tpu.vector_store %arg6[%c0_11, %c0_12, %c0_13], %14 {strides = array<i32>} : memref<1x8x256xf32, #tpu.memory_space<vmem>>, vector<1x8x256xf32>,
    %c0_14 = arith.constant 0 : index
    %c1_15 = arith.constant 1 : index
    %c0_16 = arith.constant 0 : index
    %15 = vector.load %arg6[%c0_14, %c1_15, %c0_16] : memref<1x8x256xf32, #tpu.memory_space<vmem>>, vector<1x7x256xf32>
    %16 = vector.shape_cast %15 : vector<1x7x256xf32> to vector<7x256xf32>
    %17 = vector.extract_strided_slice %8 {offsets = [0, 0], sizes = [7, 256], strides = [1, 1]} : vector<8x256xf32> to vector<7x256xf32>
    %18 = arith.addf %16, %17 : vector<7x256xf32>
    %c0_17 = arith.constant 0 : index
    %c1_18 = arith.constant 1 : index
    %c0_19 = arith.constant 0 : index
    %19 = vector.load %arg6[%c0_17, %c1_18, %c0_19] : memref<1x8x256xf32, #tpu.memory_space<vmem>>, vector<1x7x256xf32>
    %20 = vector.shape_cast %19 : vector<1x7x256xf32> to vector<7x256xf32>
    %21 = vector.shape_cast %18 : vector<7x256xf32> to vector<1x7x256xf32>
    tpu.vector_store %arg6[%c0_17, %c1_18, %c0_19], %21 {strides = array<i32>} : memref<1x8x256xf32, #tpu.memory_space<vmem>>, vector<1x7x256xf32>,
    %c0_20 = arith.constant 0 : index
    %c0_21 = arith.constant 0 : index
    %c0_22 = arith.constant 0 : index
    %22 = vector.load %arg6[%c0_20, %c0_21, %c0_22] : memref<1x8x256xf32, #tpu.memory_space<vmem>>, vector<1x7x256xf32>
    %23 = vector.shape_cast %22 : vector<1x7x256xf32> to vector<7x256xf32>
    %24 = vector.extract_strided_slice %11 {offsets = [1, 0], sizes = [7, 256], strides = [1, 1]} : vector<8x256xf32> to vector<7x256xf32>
    %25 = arith.addf %23, %24 : vector<7x256xf32>
    %c0_23 = arith.constant 0 : index
    %c0_24 = arith.constant 0 : index
    %c0_25 = arith.constant 0 : index
    %26 = vector.load %arg6[%c0_23, %c0_24, %c0_25] : memref<1x8x256xf32, #tpu.memory_space<vmem>>, vector<1x7x256xf32>
    %27 = vector.shape_cast %26 : vector<1x7x256xf32> to vector<7x256xf32>
    %28 = vector.shape_cast %25 : vector<7x256xf32> to vector<1x7x256xf32>
    tpu.vector_store %arg6[%c0_23, %c0_24, %c0_25], %28 {strides = array<i32>} : memref<1x8x256xf32, #tpu.memory_space<vmem>>, vector<1x7x256xf32>,
    %c0_26 = arith.constant 0 : index
    %c0_27 = arith.constant 0 : index
    %c0_28 = arith.constant 0 : index
    %29 = vector.load %arg6[%c0_26, %c0_27, %c0_28] : memref<1x8x256xf32, #tpu.memory_space<vmem>>, vector<1x8x256xf32>
    %30 = vector.shape_cast %29 : vector<1x8x256xf32> to vector<8x256xf32>
    %cst_29 = arith.constant dense<0.000000e+00> : vector<256xf32>
    %31 = vector.multi_reduction <add>, %30, %cst_29 [0] : vector<8x256xf32> to vector<256xf32>
    %32 = vector.shape_cast %31 : vector<256xf32> to vector<1x256xf32>
    %33 = arith.mulf %30, %30 : vector<8x256xf32>
    %cst_30 = arith.constant dense<0.000000e+00> : vector<256xf32>
    %34 = vector.multi_reduction <add>, %33, %cst_30 [0] : vector<8x256xf32> to vector<256xf32>
    %35 = vector.shape_cast %34 : vector<256xf32> to vector<1x256xf32>
    %c0_i32 = arith.constant 0 : i32
    %36 = arith.cmpi eq, %arg0, %c0_i32 : i32
    %37 = arith.extui %36 : i1 to i32
    %c0_i32_31 = arith.constant 0 : i32
    %38 = arith.cmpi ne, %37, %c0_i32_31 : i32
    scf.if %38 {
      %cst_41 = arith.constant 0.000000e+00 : f32
      %48 = vector.broadcast %cst_41 : f32 to vector<2x256xf32>
      %c0_42 = arith.constant 0 : index
      %c0_43 = arith.constant 0 : index
      %49 = vector.load %arg7[%c0_42, %c0_43] : memref<2x256xf32, #tpu.memory_space<vmem>>, vector<2x256xf32>
      tpu.vector_store %arg7[%c0_42, %c0_43], %48 {strides = array<i32>} : memref<2x256xf32, #tpu.memory_space<vmem>>, vector<2x256xf32>,
    } else {
    }
    %c0_32 = arith.constant 0 : index
    %c0_33 = arith.constant 0 : index
    %39 = vector.load %arg7[%c0_32, %c0_33] : memref<2x256xf32, #tpu.memory_space<vmem>>, vector<1x256xf32>
    %40 = arith.addf %39, %32 : vector<1x256xf32>
    %c0_34 = arith.constant 0 : index
    %c0_35 = arith.constant 0 : index
    %41 = vector.load %arg7[%c0_34, %c0_35] : memref<2x256xf32, #tpu.memory_space<vmem>>, vector<1x256xf32>
    tpu.vector_store %arg7[%c0_34, %c0_35], %40 {strides = array<i32>} : memref<2x256xf32, #tpu.memory_space<vmem>>, vector<1x256xf32>,
    %c1_36 = arith.constant 1 : index
    %c0_37 = arith.constant 0 : index
    %42 = vector.load %arg7[%c1_36, %c0_37] : memref<2x256xf32, #tpu.memory_space<vmem>>, vector<1x256xf32>
    %43 = arith.addf %42, %35 : vector<1x256xf32>
    %c1_38 = arith.constant 1 : index
    %c0_39 = arith.constant 0 : index
    %44 = vector.load %arg7[%c1_38, %c0_39] : memref<2x256xf32, #tpu.memory_space<vmem>>, vector<1x256xf32>
    tpu.vector_store %arg7[%c1_38, %c0_39], %43 {strides = array<i32>} : memref<2x256xf32, #tpu.memory_space<vmem>>, vector<1x256xf32>,
    %c1_i32 = arith.constant 1 : i32
    %45 = arith.cmpi eq, %arg0, %c1_i32 : i32
    %46 = arith.extui %45 : i1 to i32
    %c0_i32_40 = arith.constant 0 : i32
    %47 = arith.cmpi ne, %46, %c0_i32_40 : i32
    scf.if %47 {
      %c0_41 = arith.constant 0 : index
      %c0_42 = arith.constant 0 : index
      %48 = vector.load %arg7[%c0_41, %c0_42] : memref<2x256xf32, #tpu.memory_space<vmem>>, vector<2x256xf32>
      %c0_43 = arith.constant 0 : index
      %c0_44 = arith.constant 0 : index
      %49 = vector.load %arg3[%c0_43, %c0_44] : memref<256x256xf32, #tpu.memory_space<vmem>>, vector<256x256xf32>
      %cst_45 = arith.constant dense<0.000000e+00> : vector<2x256xf32>
      %50 = tpu.matmul %48, %49, %cst_45 {dimension_numbers = #tpu.dot_dimension_numbers<[1], [0], [0], [1], [0, 0, 1, 1], [], []>} : vector<2x256xf32>, vector<256x256xf32>, vector<2x256xf32> -> vector<2x256xf32>
      %51 = vector.extract_strided_slice %50 {offsets = [0, 0], sizes = [1, 256], strides = [1, 1]} : vector<2x256xf32> to vector<1x256xf32>
      %cst_46 = arith.constant 0.001953125 : f32
      %52 = vector.broadcast %cst_46 : f32 to vector<1x256xf32>
      %53 = arith.mulf %51, %52 : vector<1x256xf32>
      %54 = vector.extract_strided_slice %50 {offsets = [1, 0], sizes = [1, 256], strides = [1, 1]} : vector<2x256xf32> to vector<1x256xf32>
      %cst_47 = arith.constant 0.001953125 : f32
      %55 = vector.broadcast %cst_47 : f32 to vector<1x256xf32>
      %56 = arith.mulf %54, %55 : vector<1x256xf32>
      %57 = arith.mulf %53, %53 : vector<1x256xf32>
      %58 = arith.subf %56, %57 : vector<1x256xf32>
      %c0_48 = arith.constant 0 : index
      %c0_49 = arith.constant 0 : index
      %59 = vector.load %arg4[%c0_48, %c0_49] : memref<1x256xf32, #tpu.memory_space<vmem>>, vector<1x256xf32>
      %cst_50 = arith.constant 9.99999974E-6 : f32
      %60 = vector.broadcast %cst_50 : f32 to vector<1x256xf32>
      %61 = arith.addf %58, %60 : vector<1x256xf32>
      %62 = math.rsqrt %61 : vector<1x256xf32>
      %63 = arith.mulf %59, %62 : vector<1x256xf32>
      %c0_51 = arith.constant 0 : index
      %c0_52 = arith.constant 0 : index
      %64 = vector.load %arg5[%c0_51, %c0_52] : memref<1x256xf32, #tpu.memory_space<vmem>>, vector<1x256xf32>
      %65 = arith.mulf %53, %63 : vector<1x256xf32>
      %66 = arith.subf %64, %65 : vector<1x256xf32>
      %c0_53 = arith.constant 0 : index
      %c0_54 = arith.constant 0 : index
      %67 = vector.load %arg7[%c0_53, %c0_54] : memref<2x256xf32, #tpu.memory_space<vmem>>, vector<1x256xf32>
      tpu.vector_store %arg7[%c0_53, %c0_54], %63 {strides = array<i32>} : memref<2x256xf32, #tpu.memory_space<vmem>>, vector<1x256xf32>,
      %c1_55 = arith.constant 1 : index
      %c0_56 = arith.constant 0 : index
      %68 = vector.load %arg7[%c1_55, %c0_56] : memref<2x256xf32, #tpu.memory_space<vmem>>, vector<1x256xf32>
      tpu.vector_store %arg7[%c1_55, %c0_56], %66 {strides = array<i32>} : memref<2x256xf32, #tpu.memory_space<vmem>>, vector<1x256xf32>,
    } else {
    }
    return
  }
  func.func @transform_0(%arg0: i32) -> (i32, i32, i32) {
    %c0_i32 = arith.constant 0 : i32
    %c0_i32_0 = arith.constant 0 : i32
    %c0_i32_1 = arith.constant 0 : i32
    return %arg0, %c0_i32, %c0_i32_0 : i32, i32, i32
  }
  func.func @transform_1(%arg0: i32) -> (i32, i32, i32) {
    %c0_i32 = arith.constant 0 : i32
    %c0_i32_0 = arith.constant 0 : i32
    %c0_i32_1 = arith.constant 0 : i32
    %c0_i32_2 = arith.constant 0 : i32
    return %c0_i32, %c0_i32_0, %c0_i32_1 : i32, i32, i32
  }
  func.func @transform_2(%arg0: i32) -> (i32, i32) {
    %c0_i32 = arith.constant 0 : i32
    %c0_i32_0 = arith.constant 0 : i32
    %c0_i32_1 = arith.constant 0 : i32
    return %c0_i32, %c0_i32_0 : i32, i32
  }
  func.func @transform_3(%arg0: i32) -> (i32, i32) {
    %c0_i32 = arith.constant 0 : i32
    %c0_i32_0 = arith.constant 0 : i32
    %c0_i32_1 = arith.constant 0 : i32
    return %c0_i32, %c0_i32_0 : i32, i32
  }
  func.func @transform_4(%arg0: i32) -> (i32, i32) {
    %c0_i32 = arith.constant 0 : i32
    %c0_i32_0 = arith.constant 0 : i32
    %c0_i32_1 = arith.constant 0 : i32
    return %c0_i32, %c0_i32_0 : i32, i32
  }
  func.func @transform_5(%arg0: i32) -> (i32, i32, i32) {
    %c0_i32 = arith.constant 0 : i32
    %c0_i32_0 = arith.constant 0 : i32
    %c0_i32_1 = arith.constant 0 : i32
    return %arg0, %c0_i32, %c0_i32_0 : i32, i32, i32
  }
  func.func @transform_6(%arg0: i32) -> (i32, i32) {
    %c0_i32 = arith.constant 0 : i32
    %c0_i32_0 = arith.constant 0 : i32
    %c0_i32_1 = arith.constant 0 : i32
    return %c0_i32, %c0_i32_0 : i32, i32
  }
}

</mosaic_0001>

<llo_original>
// kernel: tpu_custom_call.1
$region0: #{tpu_custom_call.1}
  #allocation0 [shape = 'u32[]', space=smem, size = 0x4, offset = 0x4, fixed_abs, tag = 'smem constant byte address 0x4 - core index']
  #allocation1 [shape = 'u32[144,128]{1,0:T(1,128)}', space=vmem, size = 0x12000, scoped, tag = 'internal scratch']
  %s0 = inlined_call_operand.hbm [shape: f32[2,8,128], index: 0, kind: input, shape index: {}]
  %s1 = inlined_call_operand.hbm [shape: bf16[3,128,256], index: 1, kind: input, shape index: {}]
  %s2 = inlined_call_operand.hbm [shape: f32[256,256], index: 2, kind: input, shape index: {}]
  %s3 = inlined_call_operand.vmem [shape: f32[1,256], index: 3, kind: input, shape index: {}]
  %s4 = inlined_call_operand.vmem [shape: f32[1,256], index: 4, kind: input, shape index: {}]
  %s5 = inlined_call_operand.hbm [shape: f32[2,8,256], index: 5, kind: output, shape index: {0}]
  %s6 = inlined_call_operand.hbm [shape: f32[2,256], index: 6, kind: output, shape index: {1}]
  %7 = xla_tuple %s5, %s6
  %s8 = sld [smem:[#allocation0]]
  $region81: #{tpu_custom_call.1} parent=0
    _
  %s10 = ssub.s32 1, %s8
  %s11 = scalar_select 0, %s10, %s8
  $region1: #{tpu_custom_call.1} parent=0
    #allocation2 [shape = 'u8[8192]{0}', space=vmem, size = 0x2000, scoped, tag = 'input window, operand 0']
    #allocation3 [shape = 's32[2]{0}', space=sflag, size = 0x8, scoped, tag = 'scoped memory for tpu_custom_call.1']
    #allocation4 [shape = 's32[2]{0}', space=sflag, size = 0x8, scoped, tag = 'scoped memory for tpu_custom_call.1']
    #allocation5 [shape = 'u8[196608]{0}', space=vmem, size = 0x30000, scoped, tag = 'input window, operand 1, single buffered']
    #allocation6 [shape = 's32[1]{0}', space=sflag, size = 0x4, scoped, tag = 'scoped memory for tpu_custom_call.1']
    #allocation7 [shape = 'u8[262144]{0}', space=vmem, size = 0x40000, scoped, tag = 'input window, operand 2, single buffered']
    #allocation8 [shape = 'u8[16384]{0}', space=vmem, size = 0x4000, scoped, tag = 'output window, operand 0']
    #allocation9 [shape = 'u8[2048]{0}', space=vmem, size = 0x800, scoped, tag = 'output window, operand 1, single buffered']
    #allocation10 [shape = 's32[1]{0}', space=sflag, size = 0x4, scoped, tag = 'scoped memory for tpu_custom_call.1']
    %12 = vsyncpa [#allocation3], 0
    %s13 = scalar_lea.sflag [#allocation3], 1
    %14 = vsyncpa %s13, 0
    %15 = vsyncpa [#allocation6], 0
    %16 = vsyncpa [#allocation4], 0
    %s17 = scalar_lea.sflag [#allocation4], 1
    %18 = vsyncpa %s17, 0
    %19 = vsyncpa [#allocation10], 0
    loop: start=0, step=1, limit=4
    $region2: #{tpu_custom_call.1} parent=1 // loop_pre_header
      _
    $region3: #{tpu_custom_call.1} parent=1 // loop_header
      %s21 = sphi 0, %s25
      %p22 = scmp.ge.s32.totalorder %s21, 4
      %s31 = sphi 0, %s33
      %s34 = sphi 0, %s31
      %s35 = sphi 0, %s34
      %s51 = sphi 0, %s35
      %s55 = sphi 0, %s55
      %s57 = sphi 0, %s55
      %s58 = sphi 0, %s57
      %s72 = sphi 0, %s58
      %s76 = sphi 0, %s76
      %s78 = sphi 0, %s76
      %s79 = sphi 0, %s78
      %s93 = sphi 0, %s79
      %s97 = sphi 0, %s97
      %s99 = sphi 0, %s97
      %s100 = sphi 0, %s99
      %s114 = sphi 0, %s100
      %s118 = sphi 0, %s118
      %s120 = sphi 0, %s118
      %s121 = sphi 0, %s120
      %s135 = sphi 0, %s121
      %s141 = sphi 0, %s143
      %s144 = sphi 0, %s141
      %s145 = sphi 0, %s144
      %s161 = sphi 0, %s145
      %s165 = sphi 0, %s165
      %s167 = sphi 0, %s165
      %s168 = sphi 0, %s167
      %s182 = sphi 0, %s168
    $region4: #{tpu_custom_call.1} parent=1 // loop_header_branch
      %24 = sbr.rel (%p22) target = $region8
    $region5: #{tpu_custom_call.1} parent=1 // loop_body
      %s26 = ssub.s32 %s21, 1
      %s27 = ssub.s32 %s21, 2
      %s28 = sadd.s32 %s21, 1
      %s29 = ssub.s32 %s21, %s28
      %p30 = scmp.eq.s32.totalorder %s29, 0
      %s32 = sadd.s32 %s31, 1
      %s33 = scalar_select %p30, %s31, %s32
      %p36 = pneg %p30
      %p37 = scmp.eq.s32.totalorder %s21, 1
      %p38 = por %p36, %p37
      %p39 = scmp.ne.s32.totalorder %s31, %s34
      %p40 = scmp.eq.s32.totalorder %s21, 0
      %p41 = por %p39, %p40
      %p42 = scmp.ne.s32.totalorder %s31, %s34
      %p43 = scmp.eq.s32.totalorder %s26, 1
      %p44 = por %p42, %p43
      %p45 = scmp.ne.s32.totalorder %s34, %s35
      %p46 = scmp.eq.s32.totalorder %s26, 0
      %p47 = por %p45, %p46
      %p48 = scmp.ne.s32.totalorder %s34, %s35
      %p49 = scmp.eq.s32.totalorder %s27, 1
      %p50 = por %p48, %p49
      %p52 = scmp.ne.s32.totalorder %s35, %s51
      %p53 = scmp.eq.s32.totalorder %s27, 0
      %p54 = por %p52, %p53
      %s56 = sadd.s32 %s55, 1
      %p59 = scmp.eq.s32.totalorder %s21, 1
      %p60 = scmp.ne.s32.totalorder %s55, %s57
      %p61 = scmp.eq.s32.totalorder %s21, 0
      %p62 = por %p60, %p61
      %p63 = scmp.ne.s32.totalorder %s55, %s57
      %p64 = scmp.eq.s32.totalorder %s26, 1
      %p65 = por %p63, %p64
      %p66 = scmp.ne.s32.totalorder %s57, %s58
      %p67 = scmp.eq.s32.totalorder %s26, 0
      %p68 = por %p66, %p67
      %p69 = scmp.ne.s32.totalorder %s57, %s58
      %p70 = scmp.eq.s32.totalorder %s27, 1
      %p71 = por %p69, %p70
      %p73 = scmp.ne.s32.totalorder %s58, %s72
      %p74 = scmp.eq.s32.totalorder %s27, 0
      %p75 = por %p73, %p74
      %s77 = sadd.s32 %s76, 1
      %p80 = scmp.eq.s32.totalorder %s21, 1
      %p81 = scmp.ne.s32.totalorder %s76, %s78
      %p82 = scmp.eq.s32.totalorder %s21, 0
      %p83 = por %p81, %p82
      %p84 = scmp.ne.s32.totalorder %s76, %s78
      %p85 = scmp.eq.s32.totalorder %s26, 1
      %p86 = por %p84, %p85
      %p87 = scmp.ne.s32.totalorder %s78, %s79
      %p88 = scmp.eq.s32.totalorder %s26, 0
      %p89 = por %p87, %p88
      %p90 = scmp.ne.s32.totalorder %s78, %s79
      %p91 = scmp.eq.s32.totalorder %s27, 1
      %p92 = por %p90, %p91
      %p94 = scmp.ne.s32.totalorder %s79, %s93
      %p95 = scmp.eq.s32.totalorder %s27, 0
      %p96 = por %p94, %p95
      %s98 = sadd.s32 %s97, 1
      %p101 = scmp.eq.s32.totalorder %s21, 1
      %p102 = scmp.ne.s32.totalorder %s97, %s99
      %p103 = scmp.eq.s32.totalorder %s21, 0
      %p104 = por %p102, %p103
      %p105 = scmp.ne.s32.totalorder %s97, %s99
      %p106 = scmp.eq.s32.totalorder %s26, 1
      %p107 = por %p105, %p106
      %p108 = scmp.ne.s32.totalorder %s99, %s100
      %p109 = scmp.eq.s32.totalorder %s26, 0
      %p110 = por %p108, %p109
      %p111 = scmp.ne.s32.totalorder %s99, %s100
      %p112 = scmp.eq.s32.totalorder %s27, 1
      %p113 = por %p111, %p112
      %p115 = scmp.ne.s32.totalorder %s100, %s114
      %p116 = scmp.eq.s32.totalorder %s27, 0
      %p117 = por %p115, %p116
      %s119 = sadd.s32 %s118, 1
      %p122 = scmp.eq.s32.totalorder %s21, 1
      %p123 = scmp.ne.s32.totalorder %s118, %s120
      %p124 = scmp.eq.s32.totalorder %s21, 0
      %p125 = por %p123, %p124
      %p126 = scmp.ne.s32.totalorder %s118, %s120
      %p127 = scmp.eq.s32.totalorder %s26, 1
      %p128 = por %p126, %p127
      %p129 = scmp.ne.s32.totalorder %s120, %s121
      %p130 = scmp.eq.s32.totalorder %s26, 0
      %p131 = por %p129, %p130
      %p132 = scmp.ne.s32.totalorder %s120, %s121
      %p133 = scmp.eq.s32.totalorder %s27, 1
      %p134 = por %p132, %p133
      %p136 = scmp.ne.s32.totalorder %s121, %s135
      %p137 = scmp.eq.s32.totalorder %s27, 0
      %p138 = por %p136, %p137
      %s139 = ssub.s32 %s21, %s28
      %p140 = scmp.eq.s32.totalorder %s139, 0
      %s142 = sadd.s32 %s141, 1
      %s143 = scalar_select %p140, %s141, %s142
      %p146 = pneg %p140
      %p147 = scmp.eq.s32.totalorder %s21, 1
      %p148 = por %p146, %p147
      %p149 = scmp.ne.s32.totalorder %s141, %s144
      %p150 = scmp.eq.s32.totalorder %s21, 0
      %p151 = por %p149, %p150
      %p152 = scmp.ne.s32.totalorder %s141, %s144
      %p153 = scmp.eq.s32.totalorder %s26, 1
      %p154 = por %p152, %p153
      %p155 = scmp.ne.s32.totalorder %s144, %s145
      %p156 = scmp.eq.s32.totalorder %s26, 0
      %p157 = por %p155, %p156
      %p158 = scmp.ne.s32.totalorder %s144, %s145
      %p159 = scmp.eq.s32.totalorder %s27, 1
      %p160 = por %p158, %p159
      %p162 = scmp.ne.s32.totalorder %s145, %s161
      %p163 = scmp.eq.s32.totalorder %s27, 0
      %p164 = por %p162, %p163
      %s166 = sadd.s32 %s165, 1
      %p169 = scmp.eq.s32.totalorder %s21, 1
      %p170 = scmp.ne.s32.totalorder %s165, %s167
      %p171 = scmp.eq.s32.totalorder %s21, 0
      %p172 = por %p170, %p171
      %p173 = scmp.ne.s32.totalorder %s165, %s167
      %p174 = scmp.eq.s32.totalorder %s26, 1
      %p175 = por %p173, %p174
      %p176 = scmp.ne.s32.totalorder %s167, %s168
      %p177 = scmp.eq.s32.totalorder %s26, 0
      %p178 = por %p176, %p177
      %p179 = scmp.ne.s32.totalorder %s167, %s168
      %p180 = scmp.eq.s32.totalorder %s27, 1
      %p181 = por %p179, %p180
      %p183 = scmp.ne.s32.totalorder %s168, %s182
      %p184 = scmp.eq.s32.totalorder %s27, 0
      %p185 = por %p183, %p184
      %p186 = scmp.le.s32.totalorder 1, %s21
      %p187 = scmp.lt.s32.totalorder %s21, 3
      %p188 = pnand %p186, %p187
      %p189 = pneg %p188
      // Predicated region
      $region9: #{tpu_custom_call.1} parent=5 // pred_check
        _
      $region10: #{tpu_custom_call.1} parent=5 // pred_check_branch
        %191 = sbr.rel (%p188) target = $region12
      $region11: #{tpu_custom_call.1} parent=5 // pred_region
        %s192 = ssub.s32 %s21, 1
        // Predicated region
        $region13: #{tpu_custom_call.1} parent=11 // pred_check
          %p193 = pneg %p68
        $region14: #{tpu_custom_call.1} parent=11 // pred_check_branch
          %195 = sbr.rel (%p193) target = $region16
        $region15: #{tpu_custom_call.1} parent=11 // pred_region
          %s197 = ssub.s32 6144, 6144
          %198 = vsyncadd [#allocation6], %s197
          %s199 = sshll.u32 [#allocation5], 4
          %s200 = int_to_ptr.vmem [resolvable:$true] %s199
          %205 = dma.hbm_to_vmem [thread:$0]  %s1, 6144, %s200, [#allocation6], 128, 128, 8
        $region16: #{tpu_custom_call.1} parent=11 // pred_fallthru
          _
        // Predicated region
        $region17: #{tpu_custom_call.1} parent=11 // pred_check
          %p206 = pneg %p89
        $region18: #{tpu_custom_call.1} parent=11 // pred_check_branch
          %208 = sbr.rel (%p206) target = $region20
        $region19: #{tpu_custom_call.1} parent=11 // pred_region
          %s210 = ssub.s32 8192, 8192
          %211 = vsyncadd [#allocation6], %s210
          %s212 = sshll.u32 [#allocation7], 4
          %s213 = int_to_ptr.vmem [resolvable:$true] %s212
          %218 = dma.hbm_to_vmem [thread:$0]  %s2, 8192, %s213, [#allocation6], 256, 256, 16
        $region20: #{tpu_custom_call.1} parent=11 // pred_fallthru
          _
        // Predicated region
        $region21: #{tpu_custom_call.1} parent=11 // pred_check
          %p219 = pneg %p110
        $region22: #{tpu_custom_call.1} parent=11 // pred_check_branch
          %221 = sbr.rel (%p219) target = $region24
        $region23: #{tpu_custom_call.1} parent=11 // pred_region
          _
        $region24: #{tpu_custom_call.1} parent=11 // pred_fallthru
          _
        // Predicated region
        $region25: #{tpu_custom_call.1} parent=11 // pred_check
          %p222 = pneg %p131
        $region26: #{tpu_custom_call.1} parent=11 // pred_check_branch
          %224 = sbr.rel (%p222) target = $region28
        $region27: #{tpu_custom_call.1} parent=11 // pred_region
          _
        $region28: #{tpu_custom_call.1} parent=11 // pred_fallthru
          _
      $region12: #{tpu_custom_call.1} parent=5 // pred_fallthru
        _
      %p225 = scmp.lt.s32.totalorder %s21, 2
      // Predicated region
      $region29: #{tpu_custom_call.1} parent=5 // pred_check
        %p226 = pneg %p225
      $region30: #{tpu_custom_call.1} parent=5 // pred_check_branch
        %228 = sbr.rel (%p226) target = $region32
      $region31: #{tpu_custom_call.1} parent=5 // pred_region
        // Predicated region
        $region33: #{tpu_custom_call.1} parent=31 // pred_check
          %p229 = pneg %p41
        $region34: #{tpu_custom_call.1} parent=31 // pred_check_branch
          %231 = sbr.rel (%p229) target = $region36
        $region35: #{tpu_custom_call.1} parent=31 // pred_region
          %s232 = sand.u32 %s31, 1
          %s233 = scalar_lea.sflag [#allocation3], %s232
          %s234 = sand.u32 %s31, 1
          %s235 = smul.addr %s234, 8
          %s236 = scalar_lea.vmem [#allocation2], %s235
          %s238 = ssub.s32 128, 128
          %239 = vsyncadd %s233, %s238
          %s240 = smul.addr %s21, 128
          %s241 = scalar_lea.hbm %s0, %s240
          %s243 = sshll.u32 %s236, 4
          %s244 = int_to_ptr.vmem [resolvable:$true] %s243
          %246 = dma.hbm_to_vmem [thread:$0]  %s241, 128, %s244, %s233
        $region36: #{tpu_custom_call.1} parent=31 // pred_fallthru
          _
      $region32: #{tpu_custom_call.1} parent=5 // pred_fallthru
        _
      %p247 = scmp.le.s32.totalorder 1, %s21
      %p248 = scmp.lt.s32.totalorder %s21, 3
      %p249 = pnand %p247, %p248
      %p250 = pneg %p249
      // Predicated region
      $region37: #{tpu_custom_call.1} parent=5 // pred_check
        _
      $region38: #{tpu_custom_call.1} parent=5 // pred_check_branch
        %252 = sbr.rel (%p249) target = $region40
      $region39: #{tpu_custom_call.1} parent=5 // pred_region
        %s253 = ssub.s32 %s21, 1
        %s254 = sand.u32 %s34, 1
        %s255 = scalar_lea.sflag [#allocation3], %s254
        %s256 = sand.u32 %s34, 1
        %s257 = smul.addr %s256, 8
        %s258 = scalar_lea.vmem [#allocation2], %s257
        // Predicated region
        $region41: #{tpu_custom_call.1} parent=39 // pred_check
          %p259 = pneg %p47
        $region42: #{tpu_custom_call.1} parent=39 // pred_check_branch
          %261 = sbr.rel (%p259) target = $region44
        $region43: #{tpu_custom_call.1} parent=39 // pred_region
          %262 = dma.done %s255, 128
        $region44: #{tpu_custom_call.1} parent=39 // pred_fallthru
          _
        // Predicated region
        $region45: #{tpu_custom_call.1} parent=39 // pred_check
          %p263 = pneg %p68
        $region46: #{tpu_custom_call.1} parent=39 // pred_check_branch
          %265 = sbr.rel (%p263) target = $region48
        $region47: #{tpu_custom_call.1} parent=39 // pred_region
          %266 = dma.done [#allocation6], 6144
        $region48: #{tpu_custom_call.1} parent=39 // pred_fallthru
          _
        // Predicated region
        $region49: #{tpu_custom_call.1} parent=39 // pred_check
          %p267 = pneg %p89
        $region50: #{tpu_custom_call.1} parent=39 // pred_check_branch
          %269 = sbr.rel (%p267) target = $region52
        $region51: #{tpu_custom_call.1} parent=39 // pred_region
          %270 = dma.done [#allocation6], 8192
        $region52: #{tpu_custom_call.1} parent=39 // pred_fallthru
          _
        %s271 = sand.u32 %s34, 1
        %s272 = scalar_lea.sflag [#allocation3], %s271
        %s273 = sand.u32 %s34, 1
        %s274 = smul.addr %s273, 8
        %s275 = scalar_lea.vmem [#allocation2], %s274
        %p276 = pneg %p47
        %p277 = pneg %p44
        %p278 = pneg %p68
        %p279 = pneg %p65
        %p280 = pneg %p89
        %p281 = pneg %p86
        %p282 = pneg %p110
        %p283 = pneg %p107
        %p284 = pneg %p131
        %p285 = pneg %p128
        %p286 = pneg %p157
        %p287 = pneg %p154
        %s288 = sand.u32 %s144, 1
        %s289 = scalar_lea.sflag [#allocation4], %s288
        %s290 = sand.u32 %s144, 1
        %s291 = smul.addr %s290, 16
        %s292 = scalar_lea.vmem [#allocation8], %s291
        %p293 = pneg %p178
        %p294 = pneg %p175
        %v296 = vld [vmem:[%s258] sm:$0xff]
        %v297 = vpack.c.bf16 %v296, %v296
        %s298 = scalar_lea.vmem [#allocation5], 128
        %v299 = vld [vmem:[%s298] sm:$0xff]
        %v300 = vld [vmem:[%s298 + $0x8] sm:$0xff]
        %v301 = vld [vmem:[%s298 + $0x10] sm:$0xff]
        %v302 = vld [vmem:[%s298 + $0x18] sm:$0xff]
        %v303 = vld [vmem:[%s298 + $0x20] sm:$0xff]
        %v304 = vld [vmem:[%s298 + $0x28] sm:$0xff]
        %v305 = vld [vmem:[%s298 + $0x30] sm:$0xff]
        %v306 = vld [vmem:[%s298 + $0x38] sm:$0xff]
        %v307 = vld [vmem:[%s298 + $0x40] sm:$0xff]
        %v308 = vld [vmem:[%s298 + $0x48] sm:$0xff]
        %v309 = vld [vmem:[%s298 + $0x50] sm:$0xff]
        %v310 = vld [vmem:[%s298 + $0x58] sm:$0xff]
        %v311 = vld [vmem:[%s298 + $0x60] sm:$0xff]
        %v312 = vld [vmem:[%s298 + $0x68] sm:$0xff]
        %v313 = vld [vmem:[%s298 + $0x70] sm:$0xff]
        %v314 = vld [vmem:[%s298 + $0x78] sm:$0xff]
        %v331 = vunpack.c.l.b16 %v299
        %v332 = vunpack.c.h.b16 %v299
        %v333 = vunpack.c.l.b16 %v300
        %v334 = vunpack.c.h.b16 %v300
        %v335 = vunpack.c.l.b16 %v301
        %v336 = vunpack.c.h.b16 %v301
        %v337 = vunpack.c.l.b16 %v302
        %v338 = vunpack.c.h.b16 %v302
        %v339 = vunpack.c.l.b16 %v303
        %v340 = vunpack.c.h.b16 %v303
        %v341 = vunpack.c.l.b16 %v304
        %v342 = vunpack.c.h.b16 %v304
        %v343 = vunpack.c.l.b16 %v305
        %v344 = vunpack.c.h.b16 %v305
        %v345 = vunpack.c.l.b16 %v306
        %v346 = vunpack.c.h.b16 %v306
        %v347 = vunpack.c.l.b16 %v307
        %v348 = vunpack.c.h.b16 %v307
        %v349 = vunpack.c.l.b16 %v308
        %v350 = vunpack.c.h.b16 %v308
        %v351 = vunpack.c.l.b16 %v309
        %v352 = vunpack.c.h.b16 %v309
        %v353 = vunpack.c.l.b16 %v310
        %v354 = vunpack.c.h.b16 %v310
        %v355 = vunpack.c.l.b16 %v311
        %v356 = vunpack.c.h.b16 %v311
        %v357 = vunpack.c.l.b16 %v312
        %v358 = vunpack.c.h.b16 %v312
        %v359 = vunpack.c.l.b16 %v313
        %v360 = vunpack.c.h.b16 %v313
        %v361 = vunpack.c.l.b16 %v314
        %v362 = vunpack.c.h.b16 %v314
        %v363 = vpack.c.b16 %v333, %v331
        %v364 = vpack.c.b16 %v334, %v332
        %v365 = vpack.c.b16 %v337, %v335
        %v366 = vpack.c.b16 %v338, %v336
        %v367 = vpack.c.b16 %v341, %v339
        %v368 = vpack.c.b16 %v342, %v340
        %v369 = vpack.c.b16 %v345, %v343
        %v370 = vpack.c.b16 %v346, %v344
        %v371 = vpack.c.b16 %v349, %v347
        %v372 = vpack.c.b16 %v350, %v348
        %v373 = vpack.c.b16 %v353, %v351
        %v374 = vpack.c.b16 %v354, %v352
        %v375 = vpack.c.b16 %v357, %v355
        %v376 = vpack.c.b16 %v358, %v356
        %v377 = vpack.c.b16 %v361, %v359
        %v378 = vpack.c.b16 %v362, %v360
        %395 = vmatprep.subr.bf16.mxu0 %v364
        %396 = vmatpush1.bf16.msra.mxu0 %v363
        %397 = vmatprep.subr.bf16.mxu0 %v366
        %398 = vmatpush1.bf16.msra.mxu0 %v365
        %399 = vmatprep.subr.bf16.mxu0 %v368
        %400 = vmatpush1.bf16.msra.mxu0 %v367
        %401 = vmatprep.subr.bf16.mxu0 %v370
        %402 = vmatpush1.bf16.msra.mxu0 %v369
        %403 = vmatprep.subr.bf16.mxu0 %v372
        %404 = vmatpush1.bf16.msra.mxu0 %v371
        %405 = vmatprep.subr.bf16.mxu0 %v374
        %406 = vmatpush1.bf16.msra.mxu0 %v373
        %407 = vmatprep.subr.bf16.mxu0 %v376
        %408 = vmatpush1.bf16.msra.mxu0 %v375
        %409 = vmatprep.subr.bf16.mxu0 %v378
        %410 = vmatpush1.bf16.msra.mxu0 %v377
        %411 = vmatprep.subr.bf16.mxu0 0
        %412 = vmatpush1.bf16.msra.mxu0 0
        %413 = vmatprep.subr.bf16.mxu0 0
        %414 = vmatpush1.bf16.msra.mxu0 0
        %415 = vmatprep.subr.bf16.mxu0 0
        %416 = vmatpush1.bf16.msra.mxu0 0
        %417 = vmatprep.subr.bf16.mxu0 0
        %418 = vmatpush1.bf16.msra.mxu0 0
        %419 = vmatprep.subr.bf16.mxu0 0
        %420 = vmatpush1.bf16.msra.mxu0 0
        %421 = vmatprep.subr.bf16.mxu0 0
        %422 = vmatpush1.bf16.msra.mxu0 0
        %423 = vmatprep.subr.bf16.mxu0 0
        %424 = vmatpush1.bf16.msra.mxu0 0
        %425 = vmatprep.subr.bf16.mxu0 0
        %426 = vmatpush1.bf16.msra.mxu0 0
        %427 = vmatprep.mubr.bf16.mxu0 0
        %428 = vmatmul.mubr.bf16.gmra.mrb[0].mxu0 %v297
        %v429 = vpop.f32.mrb[0].mxu0
        %v430 = vadd.f32 0.0, %v429
        %v431 = vpop.f32.mrb[0].mxu0
        %v432 = vadd.f32 0.0, %v431
        %v433 = vpop.f32.mrb[0].mxu0
        %v434 = vpop.f32.mrb[0].mxu0
        %435 = vdwg.mxu0
        %v436 = vld [vmem:[#allocation5] sm:$0xff]
        %v437 = vld [vmem:[#allocation5 + $0x8] sm:$0xff]
        %v438 = vld [vmem:[#allocation5 + $0x10] sm:$0xff]
        %v439 = vld [vmem:[#allocation5 + $0x18] sm:$0xff]
        %v440 = vld [vmem:[#allocation5 + $0x20] sm:$0xff]
        %v441 = vld [vmem:[#allocation5 + $0x28] sm:$0xff]
        %v442 = vld [vmem:[#allocation5 + $0x30] sm:$0xff]
        %v443 = vld [vmem:[#allocation5 + $0x38] sm:$0xff]
        %v444 = vld [vmem:[#allocation5 + $0x40] sm:$0xff]
        %v445 = vld [vmem:[#allocation5 + $0x48] sm:$0xff]
        %v446 = vld [vmem:[#allocation5 + $0x50] sm:$0xff]
        %v447 = vld [vmem:[#allocation5 + $0x58] sm:$0xff]
        %v448 = vld [vmem:[#allocation5 + $0x60] sm:$0xff]
        %v449 = vld [vmem:[#allocation5 + $0x68] sm:$0xff]
        %v450 = vld [vmem:[#allocation5 + $0x70] sm:$0xff]
        %v451 = vld [vmem:[#allocation5 + $0x78] sm:$0xff]
        %v468 = vunpack.c.l.b16 %v436
        %v469 = vunpack.c.h.b16 %v436
        %v470 = vunpack.c.l.b16 %v437
        %v471 = vunpack.c.h.b16 %v437
        %v472 = vunpack.c.l.b16 %v438
        %v473 = vunpack.c.h.b16 %v438
        %v474 = vunpack.c.l.b16 %v439
        %v475 = vunpack.c.h.b16 %v439
        %v476 = vunpack.c.l.b16 %v440
        %v477 = vunpack.c.h.b16 %v440
        %v478 = vunpack.c.l.b16 %v441
        %v479 = vunpack.c.h.b16 %v441
        %v480 = vunpack.c.l.b16 %v442
        %v481 = vunpack.c.h.b16 %v442
        %v482 = vunpack.c.l.b16 %v443
        %v483 = vunpack.c.h.b16 %v443
        %v484 = vunpack.c.l.b16 %v444
        %v485 = vunpack.c.h.b16 %v444
        %v486 = vunpack.c.l.b16 %v445
        %v487 = vunpack.c.h.b16 %v445
        %v488 = vunpack.c.l.b16 %v446
        %v489 = vunpack.c.h.b16 %v446
        %v490 = vunpack.c.l.b16 %v447
        %v491 = vunpack.c.h.b16 %v447
        %v492 = vunpack.c.l.b16 %v448
        %v493 = vunpack.c.h.b16 %v448
        %v494 = vunpack.c.l.b16 %v449
        %v495 = vunpack.c.h.b16 %v449
        %v496 = vunpack.c.l.b16 %v450
        %v497 = vunpack.c.h.b16 %v450
        %v498 = vunpack.c.l.b16 %v451
        %v499 = vunpack.c.h.b16 %v451
        %v500 = vpack.c.b16 %v470, %v468
        %v501 = vpack.c.b16 %v471, %v469
        %v502 = vpack.c.b16 %v474, %v472
        %v503 = vpack.c.b16 %v475, %v473
        %v504 = vpack.c.b16 %v478, %v476
        %v505 = vpack.c.b16 %v479, %v477
        %v506 = vpack.c.b16 %v482, %v480
        %v507 = vpack.c.b16 %v483, %v481
        %v508 = vpack.c.b16 %v486, %v484
        %v509 = vpack.c.b16 %v487, %v485
        %v510 = vpack.c.b16 %v490, %v488
        %v511 = vpack.c.b16 %v491, %v489
        %v512 = vpack.c.b16 %v494, %v492
        %v513 = vpack.c.b16 %v495, %v493
        %v514 = vpack.c.b16 %v498, %v496
        %v515 = vpack.c.b16 %v499, %v497
        %532 = vmatprep.subr.bf16.mxu0 %v501
        %533 = vmatpush1.bf16.msra.mxu0 %v500
        %534 = vmatprep.subr.bf16.mxu0 %v503
        %535 = vmatpush1.bf16.msra.mxu0 %v502
        %536 = vmatprep.subr.bf16.mxu0 %v505
        %537 = vmatpush1.bf16.msra.mxu0 %v504
        %538 = vmatprep.subr.bf16.mxu0 %v507
        %539 = vmatpush1.bf16.msra.mxu0 %v506
        %540 = vmatprep.subr.bf16.mxu0 %v509
        %541 = vmatpush1.bf16.msra.mxu0 %v508
        %542 = vmatprep.subr.bf16.mxu0 %v511
        %543 = vmatpush1.bf16.msra.mxu0 %v510
        %544 = vmatprep.subr.bf16.mxu0 %v513
        %545 = vmatpush1.bf16.msra.mxu0 %v512
        %546 = vmatprep.subr.bf16.mxu0 %v515
        %547 = vmatpush1.bf16.msra.mxu0 %v514
        %548 = vmatprep.subr.bf16.mxu0 0
        %549 = vmatpush1.bf16.msra.mxu0 0
        %550 = vmatprep.subr.bf16.mxu0 0
        %551 = vmatpush1.bf16.msra.mxu0 0
        %552 = vmatprep.subr.bf16.mxu0 0
        %553 = vmatpush1.bf16.msra.mxu0 0
        %554 = vmatprep.subr.bf16.mxu0 0
        %555 = vmatpush1.bf16.msra.mxu0 0
        %556 = vmatprep.subr.bf16.mxu0 0
        %557 = vmatpush1.bf16.msra.mxu0 0
        %558 = vmatprep.subr.bf16.mxu0 0
        %559 = vmatpush1.bf16.msra.mxu0 0
        %560 = vmatprep.subr.bf16.mxu0 0
        %561 = vmatpush1.bf16.msra.mxu0 0
        %562 = vmatprep.subr.bf16.mxu0 0
        %563 = vmatpush1.bf16.msra.mxu0 0
        %564 = vmatprep.mubr.bf16.mxu0 0
        %565 = vmatmul.mubr.bf16.gmra.mrb[0].mxu0 %v297
        %v566 = vpop.f32.mrb[0].mxu0
        %v567 = vadd.f32 0.0, %v566
        %v568 = vpop.f32.mrb[0].mxu0
        %v569 = vadd.f32 0.0, %v568
        %v570 = vpop.f32.mrb[0].mxu0
        %v571 = vpop.f32.mrb[0].mxu0
        %572 = vdwg.mxu0
        %s573 = scalar_lea.vmem [#allocation5], 256
        %v574 = vld [vmem:[%s573] sm:$0xff]
        %v575 = vld [vmem:[%s573 + $0x8] sm:$0xff]
        %v576 = vld [vmem:[%s573 + $0x10] sm:$0xff]
        %v577 = vld [vmem:[%s573 + $0x18] sm:$0xff]
        %v578 = vld [vmem:[%s573 + $0x20] sm:$0xff]
        %v579 = vld [vmem:[%s573 + $0x28] sm:$0xff]
        %v580 = vld [vmem:[%s573 + $0x30] sm:$0xff]
        %v581 = vld [vmem:[%s573 + $0x38] sm:$0xff]
        %v582 = vld [vmem:[%s573 + $0x40] sm:$0xff]
        %v583 = vld [vmem:[%s573 + $0x48] sm:$0xff]
        %v584 = vld [vmem:[%s573 + $0x50] sm:$0xff]
        %v585 = vld [vmem:[%s573 + $0x58] sm:$0xff]
        %v586 = vld [vmem:[%s573 + $0x60] sm:$0xff]
        %v587 = vld [vmem:[%s573 + $0x68] sm:$0xff]
        %v588 = vld [vmem:[%s573 + $0x70] sm:$0xff]
        %v589 = vld [vmem:[%s573 + $0x78] sm:$0xff]
        %v606 = vunpack.c.l.b16 %v574
        %v607 = vunpack.c.h.b16 %v574
        %v608 = vunpack.c.l.b16 %v575
        %v609 = vunpack.c.h.b16 %v575
        %v610 = vunpack.c.l.b16 %v576
        %v611 = vunpack.c.h.b16 %v576
        %v612 = vunpack.c.l.b16 %v577
        %v613 = vunpack.c.h.b16 %v577
        %v614 = vunpack.c.l.b16 %v578
        %v615 = vunpack.c.h.b16 %v578
        %v616 = vunpack.c.l.b16 %v579
        %v617 = vunpack.c.h.b16 %v579
        %v618 = vunpack.c.l.b16 %v580
        %v619 = vunpack.c.h.b16 %v580
        %v620 = vunpack.c.l.b16 %v581
        %v621 = vunpack.c.h.b16 %v581
        %v622 = vunpack.c.l.b16 %v582
        %v623 = vunpack.c.h.b16 %v582
        %v624 = vunpack.c.l.b16 %v583
        %v625 = vunpack.c.h.b16 %v583
        %v626 = vunpack.c.l.b16 %v584
        %v627 = vunpack.c.h.b16 %v584
        %v628 = vunpack.c.l.b16 %v585
        %v629 = vunpack.c.h.b16 %v585
        %v630 = vunpack.c.l.b16 %v586
        %v631 = vunpack.c.h.b16 %v586
        %v632 = vunpack.c.l.b16 %v587
        %v633 = vunpack.c.h.b16 %v587
        %v634 = vunpack.c.l.b16 %v588
        %v635 = vunpack.c.h.b16 %v588
        %v636 = vunpack.c.l.b16 %v589
        %v637 = vunpack.c.h.b16 %v589
        %v638 = vpack.c.b16 %v608, %v606
        %v639 = vpack.c.b16 %v609, %v607
        %v640 = vpack.c.b16 %v612, %v610
        %v641 = vpack.c.b16 %v613, %v611
        %v642 = vpack.c.b16 %v616, %v614
        %v643 = vpack.c.b16 %v617, %v615
        %v644 = vpack.c.b16 %v620, %v618
        %v645 = vpack.c.b16 %v621, %v619
        %v646 = vpack.c.b16 %v624, %v622
        %v647 = vpack.c.b16 %v625, %v623
        %v648 = vpack.c.b16 %v628, %v626
        %v649 = vpack.c.b16 %v629, %v627
        %v650 = vpack.c.b16 %v632, %v630
        %v651 = vpack.c.b16 %v633, %v631
        %v652 = vpack.c.b16 %v636, %v634
        %v653 = vpack.c.b16 %v637, %v635
        %670 = vmatprep.subr.bf16.mxu0 %v639
        %671 = vmatpush1.bf16.msra.mxu0 %v638
        %672 = vmatprep.subr.bf16.mxu0 %v641
        %673 = vmatpush1.bf16.msra.mxu0 %v640
        %674 = vmatprep.subr.bf16.mxu0 %v643
        %675 = vmatpush1.bf16.msra.mxu0 %v642
        %676 = vmatprep.subr.bf16.mxu0 %v645
        %677 = vmatpush1.bf16.msra.mxu0 %v644
        %678 = vmatprep.subr.bf16.mxu0 %v647
        %679 = vmatpush1.bf16.msra.mxu0 %v646
        %680 = vmatprep.subr.bf16.mxu0 %v649
        %681 = vmatpush1.bf16.msra.mxu0 %v648
        %682 = vmatprep.subr.bf16.mxu0 %v651
        %683 = vmatpush1.bf16.msra.mxu0 %v650
        %684 = vmatprep.subr.bf16.mxu0 %v653
        %685 = vmatpush1.bf16.msra.mxu0 %v652
        %686 = vmatprep.subr.bf16.mxu0 0
        %687 = vmatpush1.bf16.msra.mxu0 0
        %688 = vmatprep.subr.bf16.mxu0 0
        %689 = vmatpush1.bf16.msra.mxu0 0
        %690 = vmatprep.subr.bf16.mxu0 0
        %691 = vmatpush1.bf16.msra.mxu0 0
        %692 = vmatprep.subr.bf16.mxu0 0
        %693 = vmatpush1.bf16.msra.mxu0 0
        %694 = vmatprep.subr.bf16.mxu0 0
        %695 = vmatpush1.bf16.msra.mxu0 0
        %696 = vmatprep.subr.bf16.mxu0 0
        %697 = vmatpush1.bf16.msra.mxu0 0
        %698 = vmatprep.subr.bf16.mxu0 0
        %699 = vmatpush1.bf16.msra.mxu0 0
        %700 = vmatprep.subr.bf16.mxu0 0
        %701 = vmatpush1.bf16.msra.mxu0 0
        %702 = vmatprep.mubr.bf16.mxu0 0
        %703 = vmatmul.mubr.bf16.gmra.mrb[0].mxu0 %v297
        %v704 = vpop.f32.mrb[0].mxu0
        %v705 = vadd.f32 0.0, %v704
        %v706 = vpop.f32.mrb[0].mxu0
        %v707 = vadd.f32 0.0, %v706
        %v708 = vpop.f32.mrb[0].mxu0
        %v709 = vpop.f32.mrb[0].mxu0
        %710 = vdwg.mxu0
        %711 = vst [vmem:[%s292] sm:$0xff] %v430
        %712 = vst [vmem:[%s292 + $0x8] sm:$0xff] %v432
        %v713 = vld [vmem:[%s292] sm:$0xfe]
        %v714 = vld [vmem:[%s292 + $0x8] sm:$0xfe]
        %v717 = vrot.slane %v567, 7
        %v718 = vrot.slane %v569, 7
        %v721 = vadd.f32 %v713, %v717
        %v722 = vadd.f32 %v714, %v718
        %723 = vst [vmem:[%s292] sm:$0xfe] %v721
        %724 = vst [vmem:[%s292 + $0x8] sm:$0xfe] %v722
        %v725 = vld [vmem:[%s292] sm:$0x7f]
        %v726 = vld [vmem:[%s292 + $0x8] sm:$0x7f]
        %v729 = vrot.slane %v705, 1
        %v730 = vrot.slane %v707, 1
        %v733 = vadd.f32 %v725, %v729
        %v734 = vadd.f32 %v726, %v730
        %735 = vst [vmem:[%s292] sm:$0x7f] %v733
        %736 = vst [vmem:[%s292 + $0x8] sm:$0x7f] %v734
        %v737 = vld [vmem:[%s292] sm:$0xff]
        %v738 = vld [vmem:[%s292 + $0x8] sm:$0xff]
        %v739 = vrot.slane %v737, 4
        %v740 = vadd.f32 %v737, %v739
        %v741 = vrot.slane %v740, 2
        %v742 = vadd.f32 %v740, %v741
        %v743 = vrot.slane %v742, 1
        %v744 = vadd.f32 %v742, %v743
        %v745 = vrot.slane %v738, 4
        %v746 = vadd.f32 %v738, %v745
        %v747 = vrot.slane %v746, 2
        %v748 = vadd.f32 %v746, %v747
        %v749 = vrot.slane %v748, 1
        %v750 = vadd.f32 %v748, %v749
        %v751 = vmul.f32 %v737, %v737
        %v752 = vmul.f32 %v738, %v738
        %v753 = vrot.slane %v751, 4
        %v754 = vadd.f32 %v751, %v753
        %v755 = vrot.slane %v754, 2
        %v756 = vadd.f32 %v754, %v755
        %v757 = vrot.slane %v756, 1
        %v758 = vadd.f32 %v756, %v757
        %v759 = vrot.slane %v752, 4
        %v760 = vadd.f32 %v752, %v759
        %v761 = vrot.slane %v760, 2
        %v762 = vadd.f32 %v760, %v761
        %v763 = vrot.slane %v762, 1
        %v764 = vadd.f32 %v762, %v763
        %p765 = scmp.eq.s32.totalorder %s26, 0
        // Predicated region
        $region53: #{tpu_custom_call.1} parent=39 // pred_check
          %p766 = pneg %p765
        $region54: #{tpu_custom_call.1} parent=39 // pred_check_branch
          %768 = sbr.rel (%p766) target = $region56
        $region55: #{tpu_custom_call.1} parent=39 // pred_region
          %769 = vst [vmem:[#allocation9] sm:$0xf] 0.0
        $region56: #{tpu_custom_call.1} parent=39 // pred_fallthru
          _
        %v770 = vld [vmem:[#allocation9] ss:$2 sm:$0x3]
        %v773 = vcombine.low %v744, %v750
        %v775 = vunpack.c.l.s4 1966171168
        %v776 = vunpack.c.0.s8 %v775
        %v777 = vlaneseq
        %v778 = vshrl.u32 %v777, 7
        %v779 = vsub.s32 %v776, %v778
        %v780 = vrot.slane %v773, %v779
        %v782 = vunpack.c.l.s4 1966171168
        %v783 = vunpack.c.0.s8 %v782
        %v784 = vlaneseq
        %v785 = vshrl.u32 %v784, 7
        %v786 = vsub.s32 %v783, %v785
        %v787 = vrot.slane %v780, %v786
        %v789 = vadd.f32 %v770, %v787
        %v790 = vlaneseq
        %vm791 = vcmp.ge.s32.totalorder %v790, 0
        %vm792 = vcmp.lt.s32.totalorder %v790, 256
        %vm793 = vmand %vm791, %vm792
        %794 = vst.msk [vmem:[#allocation9] ss:$2 sm:$0x3] %vm793, %v789
        %s795 = scalar_lea.vmem [#allocation9], 1
        %v796 = vld [vmem:[%s795] ss:$2 sm:$0x3]
        %v799 = vcombine.low %v758, %v764
        %v801 = vunpack.c.l.s4 1966171168
        %v802 = vunpack.c.0.s8 %v801
        %v803 = vlaneseq
        %v804 = vshrl.u32 %v803, 7
        %v805 = vsub.s32 %v802, %v804
        %v806 = vrot.slane %v799, %v805
        %v808 = vunpack.c.l.s4 1966171168
        %v809 = vunpack.c.0.s8 %v808
        %v810 = vlaneseq
        %v811 = vshrl.u32 %v810, 7
        %v812 = vsub.s32 %v809, %v811
        %v813 = vrot.slane %v806, %v812
        %v815 = vadd.f32 %v796, %v813
        %816 = vst.msk [vmem:[%s795] ss:$2 sm:$0x3] %vm793, %v815
        %p817 = scmp.eq.s32.totalorder %s26, 1
        // Predicated region
        $region57: #{tpu_custom_call.1} parent=39 // pred_check
          %p818 = pneg %p817
        $region58: #{tpu_custom_call.1} parent=39 // pred_check_branch
          %820 = sbr.rel (%p818) target = $region60
        $region59: #{tpu_custom_call.1} parent=39 // pred_region
          %v821 = vld [vmem:[#allocation9] sm:$0xf]
          %v822 = vld [vmem:[#allocation7] sm:$0xff]
          %v823 = vld [vmem:[#allocation7 + $0x8] sm:$0xff]
          %v824 = vld [vmem:[#allocation7 + $0x10] sm:$0xff]
          %v825 = vld [vmem:[#allocation7 + $0x18] sm:$0xff]
          %v826 = vld [vmem:[#allocation7 + $0x20] sm:$0xff]
          %v827 = vld [vmem:[#allocation7 + $0x28] sm:$0xff]
          %v828 = vld [vmem:[#allocation7 + $0x30] sm:$0xff]
          %v829 = vld [vmem:[#allocation7 + $0x38] sm:$0xff]
          %v830 = vld [vmem:[#allocation7 + $0x40] sm:$0xff]
          %v831 = vld [vmem:[#allocation7 + $0x48] sm:$0xff]
          %v832 = vld [vmem:[#allocation7 + $0x50] sm:$0xff]
          %v833 = vld [vmem:[#allocation7 + $0x58] sm:$0xff]
          %v834 = vld [vmem:[#allocation7 + $0x60] sm:$0xff]
          %v835 = vld [vmem:[#allocation7 + $0x68] sm:$0xff]
          %v836 = vld [vmem:[#allocation7 + $0x70] sm:$0xff]
          %v837 = vld [vmem:[#allocation7 + $0x78] sm:$0xff]
          %v838 = vld [vmem:[#allocation7 + $0x80] sm:$0xff]
          %v839 = vld [vmem:[#allocation7 + $0x88] sm:$0xff]
          %v840 = vld [vmem:[#allocation7 + $0x90] sm:$0xff]
          %v841 = vld [vmem:[#allocation7 + $0x98] sm:$0xff]
          %v842 = vld [vmem:[#allocation7 + $0xa0] sm:$0xff]
          %v843 = vld [vmem:[#allocation7 + $0xa8] sm:$0xff]
          %v844 = vld [vmem:[#allocation7 + $0xb0] sm:$0xff]
          %v845 = vld [vmem:[#allocation7 + $0xb8] sm:$0xff]
          %v846 = vld [vmem:[#allocation7 + $0xc0] sm:$0xff]
          %v847 = vld [vmem:[#allocation7 + $0xc8] sm:$0xff]
          %v848 = vld [vmem:[#allocation7 + $0xd0] sm:$0xff]
          %v849 = vld [vmem:[#allocation7 + $0xd8] sm:$0xff]
          %v850 = vld [vmem:[#allocation7 + $0xe0] sm:$0xff]
          %v851 = vld [vmem:[#allocation7 + $0xe8] sm:$0xff]
          %v852 = vld [vmem:[#allocation7 + $0xf0] sm:$0xff]
          %v853 = vld [vmem:[#allocation7 + $0xf8] sm:$0xff]
          %v854 = vld [vmem:[#allocation7 + $0x100] sm:$0xff]
          %v855 = vld [vmem:[#allocation7 + $0x108] sm:$0xff]
          %v856 = vld [vmem:[#allocation7 + $0x110] sm:$0xff]
          %v857 = vld [vmem:[#allocation7 + $0x118] sm:$0xff]
          %v858 = vld [vmem:[#allocation7 + $0x120] sm:$0xff]
          %v859 = vld [vmem:[#allocation7 + $0x128] sm:$0xff]
          %v860 = vld [vmem:[#allocation7 + $0x130] sm:$0xff]
          %v861 = vld [vmem:[#allocation7 + $0x138] sm:$0xff]
          %v862 = vld [vmem:[#allocation7 + $0x140] sm:$0xff]
          %v863 = vld [vmem:[#allocation7 + $0x148] sm:$0xff]
          %v864 = vld [vmem:[#allocation7 + $0x150] sm:$0xff]
          %v865 = vld [vmem:[#allocation7 + $0x158] sm:$0xff]
          %v866 = vld [vmem:[#allocation7 + $0x160] sm:$0xff]
          %v867 = vld [vmem:[#allocation7 + $0x168] sm:$0xff]
          %v868 = vld [vmem:[#allocation7 + $0x170] sm:$0xff]
          %v869 = vld [vmem:[#allocation7 + $0x178] sm:$0xff]
          %v870 = vld [vmem:[#allocation7 + $0x180] sm:$0xff]
          %v871 = vld [vmem:[#allocation7 + $0x188] sm:$0xff]
          %v872 = vld [vmem:[#allocation7 + $0x190] sm:$0xff]
          %v873 = vld [vmem:[#allocation7 + $0x198] sm:$0xff]
          %v874 = vld [vmem:[#allocation7 + $0x1a0] sm:$0xff]
          %v875 = vld [vmem:[#allocation7 + $0x1a8] sm:$0xff]
          %v876 = vld [vmem:[#allocation7 + $0x1b0] sm:$0xff]
          %v877 = vld [vmem:[#allocation7 + $0x1b8] sm:$0xff]
          %v878 = vld [vmem:[#allocation7 + $0x1c0] sm:$0xff]
          %v879 = vld [vmem:[#allocation7 + $0x1c8] sm:$0xff]
          %v880 = vld [vmem:[#allocation7 + $0x1d0] sm:$0xff]
          %v881 = vld [vmem:[#allocation7 + $0x1d8] sm:$0xff]
          %v882 = vld [vmem:[#allocation7 + $0x1e0] sm:$0xff]
          %v883 = vld [vmem:[#allocation7 + $0x1e8] sm:$0xff]
          %v884 = vld [vmem:[#allocation7 + $0x1f0] sm:$0xff]
          %v885 = vld [vmem:[#allocation7 + $0x1f8] sm:$0xff]
          %v888 = vunpack.c.l.s4 1983009808
          %v889 = vunpack.c.0.s8 %v888
          %v890 = vlaneseq
          %v891 = vshrl.u32 %v890, 7
          %v892 = vsub.s32 %v889, %v891
          %v893 = vrot.slane %v821, %v892
          %v894 = vcombine.high %v893, %v893
          %897 = vmatprep.subr.mxu0 %v823
          %898 = vmatpush1.msra.mxu0 %v822
          %899 = vmatprep.subr.mxu0 %v825
          %900 = vmatpush1.msra.mxu0 %v824
          %901 = vmatprep.subr.mxu0 %v827
          %902 = vmatpush1.msra.mxu0 %v826
          %903 = vmatprep.subr.mxu0 %v829
          %904 = vmatpush1.msra.mxu0 %v828
          %905 = vmatprep.subr.mxu0 %v831
          %906 = vmatpush1.msra.mxu0 %v830
          %907 = vmatprep.subr.mxu0 %v833
          %908 = vmatpush1.msra.mxu0 %v832
          %909 = vmatprep.subr.mxu0 %v835
          %910 = vmatpush1.msra.mxu0 %v834
          %911 = vmatprep.subr.mxu0 %v837
          %912 = vmatpush1.msra.mxu0 %v836
          %913 = vmatprep.subr.mxu0 %v839
          %914 = vmatpush1.msra.mxu0 %v838
          %915 = vmatprep.subr.mxu0 %v841
          %916 = vmatpush1.msra.mxu0 %v840
          %917 = vmatprep.subr.mxu0 %v843
          %918 = vmatpush1.msra.mxu0 %v842
          %919 = vmatprep.subr.mxu0 %v845
          %920 = vmatpush1.msra.mxu0 %v844
          %921 = vmatprep.subr.mxu0 %v847
          %922 = vmatpush1.msra.mxu0 %v846
          %923 = vmatprep.subr.mxu0 %v849
          %924 = vmatpush1.msra.mxu0 %v848
          %925 = vmatprep.subr.mxu0 %v851
          %926 = vmatpush1.msra.mxu0 %v850
          %927 = vmatprep.subr.mxu0 %v853
          %928 = vmatpush1.msra.mxu0 %v852
          %929 = vmatprep.subr.mxu0 %v855
          %930 = vmatpush1.msra.mxu0 %v854
          %931 = vmatprep.subr.mxu0 %v857
          %932 = vmatpush1.msra.mxu0 %v856
          %933 = vmatprep.subr.mxu0 %v859
          %934 = vmatpush1.msra.mxu0 %v858
          %935 = vmatprep.subr.mxu0 %v861
          %936 = vmatpush1.msra.mxu0 %v860
          %937 = vmatprep.subr.mxu0 %v863
          %938 = vmatpush1.msra.mxu0 %v862
          %939 = vmatprep.subr.mxu0 %v865
          %940 = vmatpush1.msra.mxu0 %v864
          %941 = vmatprep.subr.mxu0 %v867
          %942 = vmatpush1.msra.mxu0 %v866
          %943 = vmatprep.subr.mxu0 %v869
          %944 = vmatpush1.msra.mxu0 %v868
          %945 = vmatprep.subr.mxu0 %v871
          %946 = vmatpush1.msra.mxu0 %v870
          %947 = vmatprep.subr.mxu0 %v873
          %948 = vmatpush1.msra.mxu0 %v872
          %949 = vmatprep.subr.mxu0 %v875
          %950 = vmatpush1.msra.mxu0 %v874
          %951 = vmatprep.subr.mxu0 %v877
          %952 = vmatpush1.msra.mxu0 %v876
          %953 = vmatprep.subr.mxu0 %v879
          %954 = vmatpush1.msra.mxu0 %v878
          %955 = vmatprep.subr.mxu0 %v881
          %956 = vmatpush1.msra.mxu0 %v880
          %957 = vmatprep.subr.mxu0 %v883
          %958 = vmatpush1.msra.mxu0 %v882
          %959 = vmatprep.subr.mxu0 %v885
          %960 = vmatpush1.msra.mxu0 %v884
          %961 = vmatprep.mubr.f32.mxu0 %v894
          %962 = vmatmul.mubr.f32.gmra.mrb[0].mxu0 %v893
          %v963 = vpop.f32.mrb[0].mxu0
          %v964 = vadd.f32 0.0, %v963
          %v965 = vpop.f32.mrb[0].mxu0
          %v966 = vadd.f32 0.0, %v965
          %967 = vdwg.mxu0
          %v968 = vmul.f32 %v964, 0.001953125
          %v969 = vmul.f32 %v966, 0.001953125
          %v970 = vmul.f32 %v968, %v968
          %v971 = vmul.f32 %v969, %v969
          %v974 = vrot.slane %v970, 7
          %v975 = vrot.slane %v971, 7
          %v978 = vsub.f32 %v968, %v974
          %v979 = vsub.f32 %v969, %v975
          %v980 = vld [vmem:[%s3] sm:$0x3]
          %v981 = vadd.f32 %v978, 1e-05
          %v982 = vadd.f32 %v979, 1e-05
          %v983 = vrsqrt.pop %v981
          %v984 = vrsqrt.pop %v982
          %v987 = vcombine.low %v983, %v984
          %v989 = vunpack.c.l.s4 1966171168
          %v990 = vunpack.c.0.s8 %v989
          %v991 = vlaneseq
          %v992 = vshrl.u32 %v991, 7
          %v993 = vsub.s32 %v990, %v992
          %v994 = vrot.slane %v987, %v993
          %v995 = vcombine.high %v994, %v994
          %v997 = vunpack.c.l.s4 1966171168
          %v998 = vunpack.c.0.s8 %v997
          %v999 = vlaneseq
          %v1000 = vshrl.u32 %v999, 7
          %v1001 = vsub.s32 %v998, %v1000
          %v1002 = vrot.slane %v995, %v1001
          %v1004 = vmul.f32 %v980, %v1002
          %v1005 = vld [vmem:[%s4] sm:$0x3]
          %v1007 = vlaneseq
          %v1008 = vshrl.u32 %v1007, 7
          %v1009 = vsub.s32 0, %v1008
          %v1010 = vrot.slane %v1004, %v1009
          %v1011 = vlaneseq
          %v1012 = vshrl.u32 %v1011, 7
          %v1013 = vsub.s32 1, %v1012
          %v1014 = vrot.slane %v1004, %v1013
          %v1017 = vmul.f32 %v968, %v1010
          %v1018 = vmul.f32 %v969, %v1014
          %v1021 = vcombine.low %v1017, %v1018
          %v1023 = vunpack.c.l.s4 1966171168
          %v1024 = vunpack.c.0.s8 %v1023
          %v1025 = vlaneseq
          %v1026 = vshrl.u32 %v1025, 7
          %v1027 = vsub.s32 %v1024, %v1026
          %v1028 = vrot.slane %v1021, %v1027
          %v1030 = vunpack.c.l.s4 1966171168
          %v1031 = vunpack.c.0.s8 %v1030
          %v1032 = vlaneseq
          %v1033 = vshrl.u32 %v1032, 7
          %v1034 = vsub.s32 %v1031, %v1033
          %v1035 = vrot.slane %v1028, %v1034
          %v1037 = vsub.f32 %v1005, %v1035
          %1038 = vst.msk [vmem:[#allocation9] ss:$2 sm:$0x3] %vm793, %v1004
          %1039 = vst.msk [vmem:[%s795] ss:$2 sm:$0x3] %vm793, %v1037
        $region60: #{tpu_custom_call.1} parent=39 // pred_fallthru
          _
        %s1040 = sand.u32 %s144, 1
        %s1041 = scalar_lea.sflag [#allocation4], %s1040
        %s1042 = sand.u32 %s144, 1
        %s1043 = smul.addr %s1042, 16
        %s1044 = scalar_lea.vmem [#allocation8], %s1043
        // Predicated region
        $region61: #{tpu_custom_call.1} parent=39 // pred_check
          %p1045 = pneg %p154
        $region62: #{tpu_custom_call.1} parent=39 // pred_check_branch
          %1047 = sbr.rel (%p1045) target = $region64
        $region63: #{tpu_custom_call.1} parent=39 // pred_region
          %s1049 = ssub.s32 256, 256
          %1050 = vsyncadd %s1041, %s1049
          %s1051 = smul.addr %s26, 2
          %s1052 = smul.addr %s1051, 128
          %s1053 = scalar_lea.hbm %s5, %s1052
          %s1055 = sshll.u32 %s1044, 4
          %s1056 = int_to_ptr.vmem [resolvable:$true] %s1055
          %1058 = dma.vmem_to_hbm [thread:$0]  %s1056, 256, %s1053, %s1041
        $region64: #{tpu_custom_call.1} parent=39 // pred_fallthru
          _
        // Predicated region
        $region65: #{tpu_custom_call.1} parent=39 // pred_check
          %p1059 = pneg %p175
        $region66: #{tpu_custom_call.1} parent=39 // pred_check_branch
          %1061 = sbr.rel (%p1059) target = $region68
        $region67: #{tpu_custom_call.1} parent=39 // pred_region
          %s1063 = ssub.s32 64, 64
          %1064 = vsyncadd [#allocation10], %s1063
          %s1066 = sshll.u32 [#allocation9], 4
          %s1067 = int_to_ptr.vmem [resolvable:$true] %s1066
          %1069 = dma.vmem_to_hbm [thread:$0]  %s1067, 64, %s6, [#allocation10]
        $region68: #{tpu_custom_call.1} parent=39 // pred_fallthru
          _
        // Predicated region
        $region69: #{tpu_custom_call.1} parent=39 // pred_check
          %p1070 = pneg %p175
        $region70: #{tpu_custom_call.1} parent=39 // pred_check_branch
          %1072 = sbr.rel (%p1070) target = $region72
        $region71: #{tpu_custom_call.1} parent=39 // pred_region
          %1073 = dma.done [#allocation10], 64
        $region72: #{tpu_custom_call.1} parent=39 // pred_fallthru
          _
      $region40: #{tpu_custom_call.1} parent=5 // pred_fallthru
        _
      %p1074 = scmp.le.s32.totalorder 2, %s21
      // Predicated region
      $region73: #{tpu_custom_call.1} parent=5 // pred_check
        %p1075 = pneg %p1074
      $region74: #{tpu_custom_call.1} parent=5 // pred_check_branch
        %1077 = sbr.rel (%p1075) target = $region76
      $region75: #{tpu_custom_call.1} parent=5 // pred_region
        %s1078 = ssub.s32 %s21, 2
        // Predicated region
        $region77: #{tpu_custom_call.1} parent=75 // pred_check
          %p1079 = pneg %p160
        $region78: #{tpu_custom_call.1} parent=75 // pred_check_branch
          %1081 = sbr.rel (%p1079) target = $region80
        $region79: #{tpu_custom_call.1} parent=75 // pred_region
          %s1082 = sand.u32 %s145, 1
          %s1083 = scalar_lea.sflag [#allocation4], %s1082
          %s1084 = sand.u32 %s145, 1
          %s1085 = smul.addr %s1084, 16
          %s1086 = scalar_lea.vmem [#allocation8], %s1085
          %1087 = dma.done %s1083, 256
        $region80: #{tpu_custom_call.1} parent=75 // pred_fallthru
          _
      $region76: #{tpu_custom_call.1} parent=5 // pred_fallthru
        _
    $region6: #{tpu_custom_call.1} parent=1 // loop_footer
      %s25 = sadd.s32 1, %s21
    $region7: #{tpu_custom_call.1} parent=1 // loop_footer_branch
      %20 = sbr.rel target = $region3
    $region8: #{tpu_custom_call.1} parent=1 // loop_exit
      _
    %1088 = vsyncpa [#allocation3], 1
    %s1089 = scalar_lea.sflag [#allocation3], 1
    %1090 = vsyncpa %s1089, 1
    %1091 = vsyncpa [#allocation6], 1
    %1092 = vsyncpa [#allocation4], 1
    %s1093 = scalar_lea.sflag [#allocation4], 1
    %1094 = vsyncpa %s1093, 1
    %1095 = vsyncpa [#allocation10], 1

</llo_original>
